<compile_context>
chip_gen: v6e
topology: v6e:2x2x1
jax: 0.10.0
libtpu: 0.0.40
codegen_flags: <defaults>
</compile_context>

<pallas_src>
import functools
import math
from typing import NamedTuple

import jax
import jax.numpy as jnp
from jax import lax
from jax.experimental import pallas as pl
from jax.experimental.pallas import tpu as pltpu

_INV_SQRT2 = 1.0 / math.sqrt(2.0)


def _round_up(x, m):
    return ((x + m - 1) // m) * m


def _cdiv(a, b):
    return -(-a // b)


# ----------------------------------------------------------------------------
# Kernel
# ----------------------------------------------------------------------------
def _mlp_kernel(x_ref, w1_ref, b1_ref, w2_ref, b2_ref, o_ref, acc_ref):
    # Grid: (row tiles [parallel], hidden-dim chunks [arbitrary / reduction]).
    #   x_ref:  (TM, Cp)   token tile (native dtype), constant across H chunks
    #   w1_ref: (Cp, tH)   fc1 weight chunk, (in, out) layout
    #   b1_ref: (1, tH)
    #   w2_ref: (tH, Op)   fc2 weight chunk
    #   b2_ref: (1, Op)    constant
    #   o_ref:  (TM, Op)
    #   acc_ref:(TM, Op)   f32 accumulator (VMEM scratch)
    hi = pl.program_id(1)

    @pl.when(hi == 0)
    def _():
        acc_ref[...] = jnp.zeros_like(acc_ref)

    # fc1 chunk: native-dtype operands into the MXU, f32 accumulation.
    h = jnp.dot(x_ref[...], w1_ref[...], preferred_element_type=jnp.float32)
    h = h + b1_ref[...].astype(jnp.float32)

    # Exact GELU (PyTorch nn.GELU default): 0.5 * x * (1 + erf(x / sqrt(2))),
    # kept in f32 for parity with the reference.
    h = 0.5 * h * (1.0 + lax.erf(h * _INV_SQRT2))

    # fc2 partial product for this hidden chunk; cast activation back to the
    # weight dtype (no-op for f32 weights; doubles MXU rate for bf16).
    acc_ref[...] += jnp.dot(h.astype(w2_ref.dtype), w2_ref[...],
                            preferred_element_type=jnp.float32)

    @pl.when(hi == pl.num_programs(1) - 1)
    def _():
        o_ref[...] = (acc_ref[...]
                      + b2_ref[...].astype(jnp.float32)).astype(o_ref.dtype)


# ----------------------------------------------------------------------------
# VMEM budgeting helpers
# ----------------------------------------------------------------------------
def _vmem_limit_bytes():
    # ~3/4 of physical VMEM, capped at 100 MiB (v5e/v6e: 128 MiB physical,
    # v7x: 64 MiB physical -> ~48 MiB), never below 32 MiB.
    try:
        cap = int(getattr(pltpu.get_tpu_info(), "vmem_capacity_bytes"))
    except Exception:
        cap = 64 << 20
    return int(max(32 << 20, min((cap * 3) // 4, 100 << 20)))


def _pick_hidden_chunk(Hp, th_cap):
    """Largest multiple of 128 that divides Hp and is <= th_cap."""
    th_cap = max(128, min(Hp, th_cap))
    k = Hp // 128
    best = 128
    for d in range(1, k + 1):
        if k % d == 0 and 128 * d <= th_cap:
            best = 128 * d
    return best


# ----------------------------------------------------------------------------
# Prepared (pre-padded) parameters — pad/cast ONCE, outside the hot loop.
# ----------------------------------------------------------------------------
class MlpParams(NamedTuple):
    w1: jax.Array   # (Cp, Hp)   fc1 weight, (in, out), lane-padded
    b1: jax.Array   # (1, Hp)
    w2: jax.Array   # (Hp, Op)   fc2 weight, (in, out), lane-padded
    b2: jax.Array   # (1, Op)
    c_out: int      # true output feature count


def prepare_mlp_params(w1, b1, w2, b2, weight_dtype=None):
    """Pad feature dims to multiples of 128 (lane-dense) and optionally cast.

    w1: (C_in, H), b1: (H,), w2: (H, C_out), b2: (C_out,).
    Zero padding is exact: padded hidden columns get bias 0, GELU(0)=0 and the
    matching padded w2 rows are 0, so they contribute nothing.
    """
    C_in, H = w1.shape
    C_out = w2.shape[1]
    Cp, Hp, Op = _round_up(C_in, 128), _round_up(H, 128), _round_up(C_out, 128)

    if weight_dtype is not None:
        w1 = w1.astype(weight_dtype)
        b1 = b1.astype(weight_dtype)
        w2 = w2.astype(weight_dtype)
        b2 = b2.astype(weight_dtype)

    if (Cp, Hp) != (C_in, H):
        w1 = jnp.pad(w1, ((0, Cp - C_in), (0, Hp - H)))
    if Hp != H:
        b1 = jnp.pad(b1, (0, Hp - H))
    if (Hp, Op) != (H, C_out):
        w2 = jnp.pad(w2, ((0, Hp - H), (0, Op - C_out)))
    if Op != C_out:
        b2 = jnp.pad(b2, (0, Op - C_out))

    return MlpParams(w1, b1.reshape(1, Hp), w2, b2.reshape(1, Op), C_out)


# ----------------------------------------------------------------------------
# pallas_call wrapper
# ----------------------------------------------------------------------------
@functools.partial(jax.jit, static_argnames=("c_out", "tm"))
def _mlp_pallas_impl(x, w1_p, b1_p, w2_p, b2_p, *, c_out, tm):
    B, N, C_in = x.shape
    Cp, Hp = w1_p.shape
    Op = w2_p.shape[1]
    rows = B * N

    x_bytes = jnp.dtype(x.dtype).itemsize
    w_bytes = jnp.dtype(w1_p.dtype).itemsize

    # Row tile: rounded to the dtype's sublane packing (8 f32 / 16 bf16 /
    # 32 int8), chosen so rows_p == rows whenever possible, and split into at
    # least two tiles when the token count allows (v7x dual-TC sharding).
    sub = max(8, 32 // x_bytes)
    if rows >= 2 * sub:
        n_row_tiles = max(2, _cdiv(rows, tm))
    else:
        n_row_tiles = 1
    tm_eff = _round_up(_cdiv(rows, n_row_tiles), sub)
    rows_p = _round_up(rows, tm_eff)
    n_row_tiles = rows_p // tm_eff

    # Hidden-dim chunk: size it from the VMEM budget so the (tm, tH) f32
    # intermediate and the streamed weight chunks fit comfortably.
    budget = _vmem_limit_bytes() - (4 << 20)          # headroom
    fixed = (2 * tm_eff * Cp * x_bytes                # x double-buffer
             + 2 * tm_eff * Op * x_bytes              # out double-buffer
             + tm_eff * Op * 4                        # f32 accumulator scratch
             + 2 * Op * w_bytes)                      # b2
    per_th = (2 * Cp * w_bytes + 2 * Op * w_bytes + 2 * w_bytes  # w1/w2/b1 bufs
              + tm_eff * 4 + tm_eff * w_bytes)        # live intermediate + cast
    avail = max(budget - fixed, 0)
    th_cap = max(128, (avail // max(per_th, 1)) // 128 * 128)
    th = _pick_hidden_chunk(Hp, th_cap)
    n_h = Hp // th

    grid = (n_row_tiles, n_h)

    # Activation pad only when actually needed (identity otherwise).
    x2d = x.reshape(rows, C_in)
    if rows_p != rows or Cp != C_in:
        x2d = jnp.pad(x2d, ((0, rows_p - rows), (0, Cp - C_in)))

    # Weight BlockSpecs: resident + single-buffered when a single H chunk
    # covers the whole hidden dim; streamed (default double buffer) otherwise.
    if n_h == 1:
        w1_spec = pl.BlockSpec((Cp, Hp), lambda i, h: (0, 0),
                               pipeline_mode=pl.Buffered(1))
        b1_spec = pl.BlockSpec((1, Hp), lambda i, h: (0, 0),
                               pipeline_mode=pl.Buffered(1))
        w2_spec = pl.BlockSpec((Hp, Op), lambda i, h: (0, 0),
                               pipeline_mode=pl.Buffered(1))
    else:
        w1_spec = pl.BlockSpec((Cp, th), lambda i, h: (0, h))
        b1_spec = pl.BlockSpec((1, th), lambda i, h: (0, h))
        w2_spec = pl.BlockSpec((th, Op), lambda i, h: (h, 0))
    b2_spec = pl.BlockSpec((1, Op), lambda i, h: (0, 0),
                           pipeline_mode=pl.Buffered(1))

    weight_reads = 1 if n_h == 1 else n_row_tiles
    cost = pl.CostEstimate(
        flops=2 * rows_p * Cp * Hp + 2 * rows_p * Hp * Op,
        transcendentals=rows_p * Hp,
        bytes_accessed=(rows_p * Cp * x_bytes + rows_p * Op * x_bytes
                        + weight_reads * (Cp * Hp + Hp + Hp * Op + Op) * w_bytes),
    )

    out_p = pl.pallas_call(
        _mlp_kernel,
        out_shape=jax.ShapeDtypeStruct((rows_p, Op), x.dtype),
        grid_spec=pltpu.PrefetchScalarGridSpec(
            num_scalar_prefetch=0,
            grid=grid,
            in_specs=[
                pl.BlockSpec((tm_eff, Cp), lambda i, h: (i, 0)),   # x tile
                w1_spec,                                           # fc1 weight
                b1_spec,                                           # fc1 bias
                w2_spec,                                           # fc2 weight
                b2_spec,                                           # fc2 bias
            ],
            out_specs=pl.BlockSpec((tm_eff, Op), lambda i, h: (i, 0)),
            scratch_shapes=[pltpu.VMEM((tm_eff, Op), jnp.float32)],
        ),
        compiler_params=pltpu.CompilerParams(
            dimension_semantics=("parallel", "arbitrary"),
            vmem_limit_bytes=_vmem_limit_bytes(),
        ),
        cost_estimate=cost,
    )(x2d, w1_p, b1_p, w2_p, b2_p)

    # Slice only when padding was actually materialized.
    if rows_p != rows or Op != c_out:
        out_p = out_p[:rows, :c_out]
    return out_p.reshape(B, N, c_out)


def mlp_pallas_prepared(x, params: MlpParams, *, tm=512):
    """Hot path: x (B, N, C_in) with pre-padded params from prepare_mlp_params."""
    return _mlp_pallas_impl(x, params.w1, params.b1, params.w2, params.b2,
                            c_out=params.c_out, tm=tm)


def mlp_pallas(x, w1, b1, w2, b2, *, tm=512):
    """One-shot convenience wrapper (pads weights on every call).

    x: (B, N, C_in); w1: (C_in, H), b1: (H,), w2: (H, C_out), b2: (C_out,).
    For repeated calls, use prepare_mlp_params + mlp_pallas_prepared instead.
    """
    return mlp_pallas_prepared(x, prepare_mlp_params(w1, b1, w2, b2), tm=tm)


# ----------------------------------------------------------------------------
# Reference / test harness
# ----------------------------------------------------------------------------
def _init_linear_params(key, in_features, out_features, dtype=jnp.float32):
    """Deterministic init mimicking PyTorch nn.Linear defaults."""
    k_w, k_b = jax.random.split(key)
    bound = 1.0 / math.sqrt(in_features)
    # Stored as (in, out) so the kernel multiplies x @ w directly.
    w = jax.random.uniform(k_w, (in_features, out_features),
                           minval=-bound, maxval=bound, dtype=dtype)
    b = jax.random.uniform(k_b, (out_features,),
                           minval=-bound, maxval=bound, dtype=dtype)
    return w, b


def mlp_reference(x, w1, b1, w2, b2):
    """Pure-JAX reference matching the PyTorch forward exactly."""
    h = jnp.einsum("bnc,ch->bnh", x, w1) + b1
    h = 0.5 * h * (1.0 + lax.erf(h * jnp.asarray(_INV_SQRT2, h.dtype)))
    y = jnp.einsum("bnh,ho->bno", h, w2) + b2
    return y


if __name__ == "__main__":
    # Small swin-style token layout: batch=2, tokens=8x8=64, in_features=32,
    # hidden_features=64, out_features=32.
    B, N = 2, 64
    in_features, hidden_features, out_features = 32, 64, 32

    key = jax.random.PRNGKey(0)
    k_x, k_fc1, k_fc2 = jax.random.split(key, 3)

    x = jax.random.normal(k_x, (B, N, in_features), dtype=jnp.float32)
    w1, b1 = _init_linear_params(k_fc1, in_features, hidden_features)
    w2, b2 = _init_linear_params(k_fc2, hidden_features, out_features)

    # Pad/layout the weights once (hoisted out of the per-call path), then run.
    params = prepare_mlp_params(w1, b1, w2, b2)
    out = mlp_pallas_prepared(x, params)
    out = jax.block_until_ready(out)

    ref = mlp_reference(x, w1, b1, w2, b2)
    assert out.shape == (B, N, out_features), out.shape
    assert jnp.allclose(out, ref, atol=1e-5, rtol=1e-5), \
        float(jnp.max(jnp.abs(out - ref)))

    print("KERNEL_OK")
</pallas_src>

<mosaic_0001>
module attributes {stable_mosaic.version = 11 : i64} {
  func.func @_mlp_kernel(%arg0: i32, %arg1: i32, %arg2: memref<64x128xf32, #tpu.memory_space<vmem>>, %arg3: memref<128x128xf32, #tpu.memory_space<vmem>>, %arg4: memref<1x128xf32, #tpu.memory_space<vmem>>, %arg5: memref<128x128xf32, #tpu.memory_space<vmem>>, %arg6: memref<1x128xf32, #tpu.memory_space<vmem>>, %arg7: memref<64x128xf32, #tpu.memory_space<vmem>>, %arg8: memref<64x128xf32, #tpu.memory_space<vmem>>) attributes {dimension_semantics = [#tpu.dimension_semantics<parallel>, #tpu.dimension_semantics<arbitrary>], iteration_bounds = array<i64: 2, 1>, scalar_prefetch = 0 : i64, scratch_operands = 1 : i64, tpu.core_type = #tpu.core_type<tc>, window_params = [{transform_indices = @transform_0, window_bounds = array<i64: 64, 128>}, {pipeline_mode = #tpu.pipeline_mode<synchronous>, transform_indices = @transform_1, window_bounds = array<i64: 128, 128>}, {pipeline_mode = #tpu.pipeline_mode<synchronous>, transform_indices = @transform_2, window_bounds = array<i64: 1, 128>}, {pipeline_mode = #tpu.pipeline_mode<synchronous>, transform_indices = @transform_3, window_bounds = array<i64: 128, 128>}, {pipeline_mode = #tpu.pipeline_mode<synchronous>, transform_indices = @transform_4, window_bounds = array<i64: 1, 128>}, {transform_indices = @transform_5, window_bounds = array<i64: 64, 128>}]} {
    %c0_i32 = arith.constant 0 : i32
    %0 = arith.cmpi eq, %arg1, %c0_i32 : i32
    %1 = arith.extui %0 : i1 to i32
    %c0_i32_0 = arith.constant 0 : i32
    %2 = arith.cmpi ne, %1, %c0_i32_0 : i32
    scf.if %2 {
      %cst_18 = arith.constant 0.000000e+00 : f32
      %25 = vector.broadcast %cst_18 : f32 to vector<64x128xf32>
      %c0_19 = arith.constant 0 : index
      %c0_20 = arith.constant 0 : index
      %26 = vector.load %arg8[%c0_19, %c0_20] : memref<64x128xf32, #tpu.memory_space<vmem>>, vector<64x128xf32>
      tpu.vector_store %arg8[%c0_19, %c0_20], %25 {strides = array<i32>} : memref<64x128xf32, #tpu.memory_space<vmem>>, vector<64x128xf32>,
    } else {
    }
    %c0 = arith.constant 0 : index
    %c0_1 = arith.constant 0 : index
    %3 = vector.load %arg2[%c0, %c0_1] : memref<64x128xf32, #tpu.memory_space<vmem>>, vector<64x128xf32>
    %c0_2 = arith.constant 0 : index
    %c0_3 = arith.constant 0 : index
    %4 = vector.load %arg3[%c0_2, %c0_3] : memref<128x128xf32, #tpu.memory_space<vmem>>, vector<128x128xf32>
    %cst = arith.constant dense<0.000000e+00> : vector<64x128xf32>
    %5 = tpu.matmul %3, %4, %cst {dimension_numbers = #tpu.dot_dimension_numbers<[1], [0], [0], [1], [0, 0, 1, 1], [], []>} : vector<64x128xf32>, vector<128x128xf32>, vector<64x128xf32> -> vector<64x128xf32>
    %c0_4 = arith.constant 0 : index
    %c0_5 = arith.constant 0 : index
    %6 = vector.load %arg4[%c0_4, %c0_5] : memref<1x128xf32, #tpu.memory_space<vmem>>, vector<1x128xf32>
    %7 = vector.broadcast %6 : vector<1x128xf32> to vector<64x128xf32>
    %8 = arith.addf %5, %7 : vector<64x128xf32>
    %cst_6 = arith.constant 5.000000e-01 : f32
    %9 = vector.broadcast %cst_6 : f32 to vector<64x128xf32>
    %10 = arith.mulf %9, %8 : vector<64x128xf32>
    %cst_7 = arith.constant 0.707106769 : f32
    %11 = vector.broadcast %cst_7 : f32 to vector<64x128xf32>
    %12 = arith.mulf %8, %11 : vector<64x128xf32>
    %13 = math.erf %12 : vector<64x128xf32>
    %cst_8 = arith.constant 1.000000e+00 : f32
    %14 = vector.broadcast %cst_8 : f32 to vector<64x128xf32>
    %15 = arith.addf %14, %13 : vector<64x128xf32>
    %16 = arith.mulf %10, %15 : vector<64x128xf32>
    %c0_9 = arith.constant 0 : index
    %c0_10 = arith.constant 0 : index
    %17 = vector.load %arg8[%c0_9, %c0_10] : memref<64x128xf32, #tpu.memory_space<vmem>>, vector<64x128xf32>
    %c0_11 = arith.constant 0 : index
    %c0_12 = arith.constant 0 : index
    %18 = vector.load %arg5[%c0_11, %c0_12] : memref<128x128xf32, #tpu.memory_space<vmem>>, vector<128x128xf32>
    %cst_13 = arith.constant dense<0.000000e+00> : vector<64x128xf32>
    %19 = tpu.matmul %16, %18, %cst_13 {dimension_numbers = #tpu.dot_dimension_numbers<[1], [0], [0], [1], [0, 0, 1, 1], [], []>} : vector<64x128xf32>, vector<128x128xf32>, vector<64x128xf32> -> vector<64x128xf32>
    %20 = arith.addf %17, %19 : vector<64x128xf32>
    %c0_14 = arith.constant 0 : index
    %c0_15 = arith.constant 0 : index
    %21 = vector.load %arg8[%c0_14, %c0_15] : memref<64x128xf32, #tpu.memory_space<vmem>>, vector<64x128xf32>
    tpu.vector_store %arg8[%c0_14, %c0_15], %20 {strides = array<i32>} : memref<64x128xf32, #tpu.memory_space<vmem>>, vector<64x128xf32>,
    %c0_i32_16 = arith.constant 0 : i32
    %22 = arith.cmpi eq, %arg1, %c0_i32_16 : i32
    %23 = arith.extui %22 : i1 to i32
    %c0_i32_17 = arith.constant 0 : i32
    %24 = arith.cmpi ne, %23, %c0_i32_17 : i32
    scf.if %24 {
      %c0_18 = arith.constant 0 : index
      %c0_19 = arith.constant 0 : index
      %25 = vector.load %arg8[%c0_18, %c0_19] : memref<64x128xf32, #tpu.memory_space<vmem>>, vector<64x128xf32>
      %c0_20 = arith.constant 0 : index
      %c0_21 = arith.constant 0 : index
      %26 = vector.load %arg6[%c0_20, %c0_21] : memref<1x128xf32, #tpu.memory_space<vmem>>, vector<1x128xf32>
      %27 = vector.broadcast %26 : vector<1x128xf32> to vector<64x128xf32>
      %28 = arith.addf %25, %27 : vector<64x128xf32>
      %c0_22 = arith.constant 0 : index
      %c0_23 = arith.constant 0 : index
      %29 = vector.load %arg7[%c0_22, %c0_23] : memref<64x128xf32, #tpu.memory_space<vmem>>, vector<64x128xf32>
      tpu.vector_store %arg7[%c0_22, %c0_23], %28 {strides = array<i32>} : memref<64x128xf32, #tpu.memory_space<vmem>>, vector<64x128xf32>,
    } else {
    }
    return
  }
  func.func @transform_0(%arg0: i32, %arg1: i32) -> (i32, i32) {
    %c0_i32 = arith.constant 0 : i32
    %c0_i32_0 = arith.constant 0 : i32
    return %arg0, %c0_i32 : i32, i32
  }
  func.func @transform_1(%arg0: i32, %arg1: i32) -> (i32, i32) {
    %c0_i32 = arith.constant 0 : i32
    %c0_i32_0 = arith.constant 0 : i32
    %c0_i32_1 = arith.constant 0 : i32
    return %c0_i32, %c0_i32_0 : i32, i32
  }
  func.func @transform_2(%arg0: i32, %arg1: i32) -> (i32, i32) {
    %c0_i32 = arith.constant 0 : i32
    %c0_i32_0 = arith.constant 0 : i32
    %c0_i32_1 = arith.constant 0 : i32
    return %c0_i32, %c0_i32_0 : i32, i32
  }
  func.func @transform_3(%arg0: i32, %arg1: i32) -> (i32, i32) {
    %c0_i32 = arith.constant 0 : i32
    %c0_i32_0 = arith.constant 0 : i32
    %c0_i32_1 = arith.constant 0 : i32
    return %c0_i32, %c0_i32_0 : i32, i32
  }
  func.func @transform_4(%arg0: i32, %arg1: i32) -> (i32, i32) {
    %c0_i32 = arith.constant 0 : i32
    %c0_i32_0 = arith.constant 0 : i32
    %c0_i32_1 = arith.constant 0 : i32
    return %c0_i32, %c0_i32_0 : i32, i32
  }
  func.func @transform_5(%arg0: i32, %arg1: i32) -> (i32, i32) {
    %c0_i32 = arith.constant 0 : i32
    %c0_i32_0 = arith.constant 0 : i32
    return %arg0, %c0_i32 : i32, i32
  }
}

</mosaic_0001>

<llo_original>
// kernel: _mlp_pallas_impl.1
$region0: #{_mlp_pallas_impl.1}
  #allocation0 [shape = 'u32[]', space=smem, size = 0x4, offset = 0x4, fixed_abs, tag = 'smem constant byte address 0x4 - core index']
  #allocation1 [shape = 'u32[144,128]{1,0:T(1,128)}', space=vmem, size = 0x12000, scoped, tag = 'internal scratch']
  #allocation2 [shape = 'f32[64,128]{1,0:T(8,128)}', space=vmem, size = 0x8000, scoped, tag = 'scratch operand']
  %s0 = inlined_call_operand.vmem [shape: f32[128,128], index: 0, kind: input, shape index: {}]
  %s1 = inlined_call_operand.vmem [shape: f32[128,128], index: 1, kind: input, shape index: {}]
  %s2 = inlined_call_operand.vmem [shape: f32[1,128], index: 2, kind: input, shape index: {}]
  %s3 = inlined_call_operand.vmem [shape: f32[128,128], index: 3, kind: input, shape index: {}]
  %s4 = inlined_call_operand.vmem [shape: f32[1,128], index: 4, kind: input, shape index: {}]
  %s5 = inlined_call_operand.vmem [shape: f32[128,128], index: 5, kind: output, shape index: {}]
  %s6 = sld [smem:[#allocation0]]
  $region61: #{_mlp_pallas_impl.1} parent=0
    _
  %s8 = ssub.s32 1, %s6
  %s9 = scalar_select 0, %s8, %s6
  loop: start=0, step=1, limit=4
  $region2: #{_mlp_pallas_impl.1} parent=0 // loop_pre_header
    _
  $region3: #{_mlp_pallas_impl.1} parent=0 // loop_header
    %s11 = sphi 0, %s15
    %p12 = scmp.ge.s32.totalorder %s11, 4
    %s18 = sphi 0, %s30
    %s19 = sphi 0, %s26
    %s20 = sphi 0, %s18
    %s21 = sphi 0, %s19
    %s22 = sphi 0, %s20
    %s23 = sphi 0, %s21
    %s33 = sphi 0, %s35
    %s36 = sphi 0, %s33
    %s37 = sphi 0, %s36
    %s53 = sphi 0, %s37
    %s57 = sphi 0, %s57
    %s59 = sphi 0, %s57
    %s60 = sphi 0, %s59
    %s74 = sphi 0, %s60
    %s78 = sphi 0, %s78
    %s80 = sphi 0, %s78
    %s81 = sphi 0, %s80
    %s95 = sphi 0, %s81
    %s99 = sphi 0, %s99
    %s101 = sphi 0, %s99
    %s102 = sphi 0, %s101
    %s116 = sphi 0, %s102
    %s120 = sphi 0, %s120
    %s122 = sphi 0, %s120
    %s123 = sphi 0, %s122
    %s137 = sphi 0, %s123
    %s143 = sphi 0, %s145
    %s146 = sphi 0, %s143
    %s147 = sphi 0, %s146
    %s163 = sphi 0, %s147
  $region4: #{_mlp_pallas_impl.1} parent=0 // loop_header_branch
    %14 = sbr.rel (%p12) target = $region8
  $region5: #{_mlp_pallas_impl.1} parent=0 // loop_body
    %s16 = ssub.s32 %s11, 1
    %s17 = ssub.s32 %s11, 2
    %s24 = sadd.s32 1, %s19
    %p25 = scmp.ge.s32.totalorder %s24, 1
    %s26 = scalar_select %p25, 0, %s24
    %s27 = sadd.s32 1, %s18
    %s28 = scalar_select %p25, %s27, %s18
    %p29 = scmp.ge.s32.totalorder %s28, 2
    %s30 = scalar_select %p29, 0, %s28
    %s31 = ssub.s32 %s18, %s30
    %p32 = scmp.eq.s32.totalorder %s31, 0
    %s34 = sadd.s32 %s33, 1
    %s35 = scalar_select %p32, %s33, %s34
    %p38 = pneg %p32
    %p39 = scmp.eq.s32.totalorder %s11, 1
    %p40 = por %p38, %p39
    %p41 = scmp.ne.s32.totalorder %s33, %s36
    %p42 = scmp.eq.s32.totalorder %s11, 0
    %p43 = por %p41, %p42
    %p44 = scmp.ne.s32.totalorder %s33, %s36
    %p45 = scmp.eq.s32.totalorder %s16, 1
    %p46 = por %p44, %p45
    %p47 = scmp.ne.s32.totalorder %s36, %s37
    %p48 = scmp.eq.s32.totalorder %s16, 0
    %p49 = por %p47, %p48
    %p50 = scmp.ne.s32.totalorder %s36, %s37
    %p51 = scmp.eq.s32.totalorder %s17, 1
    %p52 = por %p50, %p51
    %p54 = scmp.ne.s32.totalorder %s37, %s53
    %p55 = scmp.eq.s32.totalorder %s17, 0
    %p56 = por %p54, %p55
    %s58 = sadd.s32 %s57, 1
    %p61 = scmp.eq.s32.totalorder %s11, 1
    %p62 = scmp.ne.s32.totalorder %s57, %s59
    %p63 = scmp.eq.s32.totalorder %s11, 0
    %p64 = por %p62, %p63
    %p65 = scmp.ne.s32.totalorder %s57, %s59
    %p66 = scmp.eq.s32.totalorder %s16, 1
    %p67 = por %p65, %p66
    %p68 = scmp.ne.s32.totalorder %s59, %s60
    %p69 = scmp.eq.s32.totalorder %s16, 0
    %p70 = por %p68, %p69
    %p71 = scmp.ne.s32.totalorder %s59, %s60
    %p72 = scmp.eq.s32.totalorder %s17, 1
    %p73 = por %p71, %p72
    %p75 = scmp.ne.s32.totalorder %s60, %s74
    %p76 = scmp.eq.s32.totalorder %s17, 0
    %p77 = por %p75, %p76
    %s79 = sadd.s32 %s78, 1
    %p82 = scmp.eq.s32.totalorder %s11, 1
    %p83 = scmp.ne.s32.totalorder %s78, %s80
    %p84 = scmp.eq.s32.totalorder %s11, 0
    %p85 = por %p83, %p84
    %p86 = scmp.ne.s32.totalorder %s78, %s80
    %p87 = scmp.eq.s32.totalorder %s16, 1
    %p88 = por %p86, %p87
    %p89 = scmp.ne.s32.totalorder %s80, %s81
    %p90 = scmp.eq.s32.totalorder %s16, 0
    %p91 = por %p89, %p90
    %p92 = scmp.ne.s32.totalorder %s80, %s81
    %p93 = scmp.eq.s32.totalorder %s17, 1
    %p94 = por %p92, %p93
    %p96 = scmp.ne.s32.totalorder %s81, %s95
    %p97 = scmp.eq.s32.totalorder %s17, 0
    %p98 = por %p96, %p97
    %s100 = sadd.s32 %s99, 1
    %p103 = scmp.eq.s32.totalorder %s11, 1
    %p104 = scmp.ne.s32.totalorder %s99, %s101
    %p105 = scmp.eq.s32.totalorder %s11, 0
    %p106 = por %p104, %p105
    %p107 = scmp.ne.s32.totalorder %s99, %s101
    %p108 = scmp.eq.s32.totalorder %s16, 1
    %p109 = por %p107, %p108
    %p110 = scmp.ne.s32.totalorder %s101, %s102
    %p111 = scmp.eq.s32.totalorder %s16, 0
    %p112 = por %p110, %p111
    %p113 = scmp.ne.s32.totalorder %s101, %s102
    %p114 = scmp.eq.s32.totalorder %s17, 1
    %p115 = por %p113, %p114
    %p117 = scmp.ne.s32.totalorder %s102, %s116
    %p118 = scmp.eq.s32.totalorder %s17, 0
    %p119 = por %p117, %p118
    %s121 = sadd.s32 %s120, 1
    %p124 = scmp.eq.s32.totalorder %s11, 1
    %p125 = scmp.ne.s32.totalorder %s120, %s122
    %p126 = scmp.eq.s32.totalorder %s11, 0
    %p127 = por %p125, %p126
    %p128 = scmp.ne.s32.totalorder %s120, %s122
    %p129 = scmp.eq.s32.totalorder %s16, 1
    %p130 = por %p128, %p129
    %p131 = scmp.ne.s32.totalorder %s122, %s123
    %p132 = scmp.eq.s32.totalorder %s16, 0
    %p133 = por %p131, %p132
    %p134 = scmp.ne.s32.totalorder %s122, %s123
    %p135 = scmp.eq.s32.totalorder %s17, 1
    %p136 = por %p134, %p135
    %p138 = scmp.ne.s32.totalorder %s123, %s137
    %p139 = scmp.eq.s32.totalorder %s17, 0
    %p140 = por %p138, %p139
    %s141 = ssub.s32 %s18, %s30
    %p142 = scmp.eq.s32.totalorder %s141, 0
    %s144 = sadd.s32 %s143, 1
    %s145 = scalar_select %p142, %s143, %s144
    %p148 = pneg %p142
    %p149 = scmp.eq.s32.totalorder %s11, 1
    %p150 = por %p148, %p149
    %p151 = scmp.ne.s32.totalorder %s143, %s146
    %p152 = scmp.eq.s32.totalorder %s11, 0
    %p153 = por %p151, %p152
    %p154 = scmp.ne.s32.totalorder %s143, %s146
    %p155 = scmp.eq.s32.totalorder %s16, 1
    %p156 = por %p154, %p155
    %p157 = scmp.ne.s32.totalorder %s146, %s147
    %p158 = scmp.eq.s32.totalorder %s16, 0
    %p159 = por %p157, %p158
    %p160 = scmp.ne.s32.totalorder %s146, %s147
    %p161 = scmp.eq.s32.totalorder %s17, 1
    %p162 = por %p160, %p161
    %p164 = scmp.ne.s32.totalorder %s147, %s163
    %p165 = scmp.eq.s32.totalorder %s17, 0
    %p166 = por %p164, %p165
    %p167 = scmp.le.s32.totalorder 1, %s11
    %p168 = scmp.lt.s32.totalorder %s11, 3
    %p169 = pnand %p167, %p168
    %p170 = pneg %p169
    // Predicated region
    $region9: #{_mlp_pallas_impl.1} parent=5 // pred_check
      _
    $region10: #{_mlp_pallas_impl.1} parent=5 // pred_check_branch
      %172 = sbr.rel (%p169) target = $region12
    $region11: #{_mlp_pallas_impl.1} parent=5 // pred_region
      %s173 = ssub.s32 %s11, 1
      // Predicated region
      $region13: #{_mlp_pallas_impl.1} parent=11 // pred_check
        %p174 = pneg %p70
      $region14: #{_mlp_pallas_impl.1} parent=11 // pred_check_branch
        %176 = sbr.rel (%p174) target = $region16
      $region15: #{_mlp_pallas_impl.1} parent=11 // pred_region
        _
      $region16: #{_mlp_pallas_impl.1} parent=11 // pred_fallthru
        _
      // Predicated region
      $region17: #{_mlp_pallas_impl.1} parent=11 // pred_check
        %p177 = pneg %p91
      $region18: #{_mlp_pallas_impl.1} parent=11 // pred_check_branch
        %179 = sbr.rel (%p177) target = $region20
      $region19: #{_mlp_pallas_impl.1} parent=11 // pred_region
        _
      $region20: #{_mlp_pallas_impl.1} parent=11 // pred_fallthru
        _
      // Predicated region
      $region21: #{_mlp_pallas_impl.1} parent=11 // pred_check
        %p180 = pneg %p112
      $region22: #{_mlp_pallas_impl.1} parent=11 // pred_check_branch
        %182 = sbr.rel (%p180) target = $region24
      $region23: #{_mlp_pallas_impl.1} parent=11 // pred_region
        _
      $region24: #{_mlp_pallas_impl.1} parent=11 // pred_fallthru
        _
      // Predicated region
      $region25: #{_mlp_pallas_impl.1} parent=11 // pred_check
        %p183 = pneg %p133
      $region26: #{_mlp_pallas_impl.1} parent=11 // pred_check_branch
        %185 = sbr.rel (%p183) target = $region28
      $region27: #{_mlp_pallas_impl.1} parent=11 // pred_region
        _
      $region28: #{_mlp_pallas_impl.1} parent=11 // pred_fallthru
        _
    $region12: #{_mlp_pallas_impl.1} parent=5 // pred_fallthru
      _
    %p186 = scmp.lt.s32.totalorder %s11, 2
    // Predicated region
    $region29: #{_mlp_pallas_impl.1} parent=5 // pred_check
      %p187 = pneg %p186
    $region30: #{_mlp_pallas_impl.1} parent=5 // pred_check_branch
      %189 = sbr.rel (%p187) target = $region32
    $region31: #{_mlp_pallas_impl.1} parent=5 // pred_region
      // Predicated region
      $region33: #{_mlp_pallas_impl.1} parent=31 // pred_check
        %p190 = pneg %p43
      $region34: #{_mlp_pallas_impl.1} parent=31 // pred_check_branch
        %192 = sbr.rel (%p190) target = $region36
      $region35: #{_mlp_pallas_impl.1} parent=31 // pred_region
        %s193 = smul.u32 8, %s18
        %p194 = scmp.lt.s32.totalorder %s193, 15
        %s195 = scalar_select %p194, %s193, 15
        %s196 = smul.addr %s195, 8
        %s197 = scalar_lea.vmem %s0, %s196
        %s198 = smul.u32 8, %s18
      $region36: #{_mlp_pallas_impl.1} parent=31 // pred_fallthru
        _
    $region32: #{_mlp_pallas_impl.1} parent=5 // pred_fallthru
      _
    %p199 = scmp.le.s32.totalorder 1, %s11
    %p200 = scmp.lt.s32.totalorder %s11, 3
    %p201 = pnand %p199, %p200
    %p202 = pneg %p201
    // Predicated region
    $region37: #{_mlp_pallas_impl.1} parent=5 // pred_check
      _
    $region38: #{_mlp_pallas_impl.1} parent=5 // pred_check_branch
      %204 = sbr.rel (%p201) target = $region40
    $region39: #{_mlp_pallas_impl.1} parent=5 // pred_region
      %s205 = ssub.s32 %s11, 1
      %s206 = smul.u32 8, %s20
      %p207 = scmp.lt.s32.totalorder %s206, 15
      %s208 = scalar_select %p207, %s206, 15
      %s209 = smul.addr %s208, 8
      %s210 = scalar_lea.vmem %s0, %s209
      %p211 = pneg %p49
      %p212 = pneg %p46
      %p213 = pneg %p70
      %p214 = pneg %p67
      %p215 = pneg %p91
      %p216 = pneg %p88
      %p217 = pneg %p112
      %p218 = pneg %p109
      %p219 = pneg %p133
      %p220 = pneg %p130
      %p221 = pneg %p159
      %p222 = pneg %p156
      %s223 = smul.u32 8, %s20
      %p224 = scmp.lt.s32.totalorder %s223, 15
      %s225 = scalar_select %p224, %s223, 15
      %s226 = smul.addr %s225, 8
      %s227 = scalar_lea.vmem %s5, %s226
      %s228 = smul.u32 8, %s20
      %p229 = scmp.lt.s32.totalorder %s228, 15
      %s230 = scalar_select %p229, %s228, 15
      %s231 = smul.addr %s230, 8
      %s232 = scalar_lea.vmem %s0, %s231
      %s233 = smul.u32 8, %s20
      %s234 = smul.u32 8, %s20
      %p235 = scmp.lt.s32.totalorder %s234, 15
      %s236 = scalar_select %p235, %s234, 15
      %s237 = smul.addr %s236, 8
      %s238 = scalar_lea.vmem %s5, %s237
      %s239 = smul.u32 8, %s20
      %p240 = scmp.eq.s32.totalorder %s21, 0
      // Predicated region
      $region41: #{_mlp_pallas_impl.1} parent=39 // pred_check
        %p241 = pneg %p240
      $region42: #{_mlp_pallas_impl.1} parent=39 // pred_check_branch
        %243 = sbr.rel (%p241) target = $region44
      $region43: #{_mlp_pallas_impl.1} parent=39 // pred_region
        %244 = vst [vmem:[#allocation2] sm:$0xff] 0.0
        %245 = vst [vmem:[#allocation2 + $0x8] sm:$0xff] 0.0
        %246 = vst [vmem:[#allocation2 + $0x10] sm:$0xff] 0.0
        %247 = vst [vmem:[#allocation2 + $0x18] sm:$0xff] 0.0
        %248 = vst [vmem:[#allocation2 + $0x20] sm:$0xff] 0.0
        %249 = vst [vmem:[#allocation2 + $0x28] sm:$0xff] 0.0
        %250 = vst [vmem:[#allocation2 + $0x30] sm:$0xff] 0.0
        %251 = vst [vmem:[#allocation2 + $0x38] sm:$0xff] 0.0
      $region44: #{_mlp_pallas_impl.1} parent=39 // pred_fallthru
        _
      %v252 = vld [vmem:[%s232] sm:$0xff]
      %v253 = vld [vmem:[%s232 + $0x8] sm:$0xff]
      %v254 = vld [vmem:[%s232 + $0x10] sm:$0xff]
      %v255 = vld [vmem:[%s232 + $0x18] sm:$0xff]
      %v256 = vld [vmem:[%s232 + $0x20] sm:$0xff]
      %v257 = vld [vmem:[%s232 + $0x28] sm:$0xff]
      %v258 = vld [vmem:[%s232 + $0x30] sm:$0xff]
      %v259 = vld [vmem:[%s232 + $0x38] sm:$0xff]
      %v260 = vld [vmem:[%s1] sm:$0xff]
      %v261 = vld [vmem:[%s1 + $0x8] sm:$0xff]
      %v262 = vld [vmem:[%s1 + $0x10] sm:$0xff]
      %v263 = vld [vmem:[%s1 + $0x18] sm:$0xff]
      %v264 = vld [vmem:[%s1 + $0x20] sm:$0xff]
      %v265 = vld [vmem:[%s1 + $0x28] sm:$0xff]
      %v266 = vld [vmem:[%s1 + $0x30] sm:$0xff]
      %v267 = vld [vmem:[%s1 + $0x38] sm:$0xff]
      %v268 = vld [vmem:[%s1 + $0x40] sm:$0xff]
      %v269 = vld [vmem:[%s1 + $0x48] sm:$0xff]
      %v270 = vld [vmem:[%s1 + $0x50] sm:$0xff]
      %v271 = vld [vmem:[%s1 + $0x58] sm:$0xff]
      %v272 = vld [vmem:[%s1 + $0x60] sm:$0xff]
      %v273 = vld [vmem:[%s1 + $0x68] sm:$0xff]
      %v274 = vld [vmem:[%s1 + $0x70] sm:$0xff]
      %v275 = vld [vmem:[%s1 + $0x78] sm:$0xff]
      %v276 = vld [vmem:[%s2] sm:$0x1]
      %v278 = vlaneseq
      %v279 = vshrl.u32 %v278, 7
      %v280 = vsub.s32 0, %v279
      %v281 = vrot.slane %v276, %v280
      %283 = vmatprep.subr.mxu0 0.0
      %284 = vmatpush1.msra.mxu0 %v275
      %285 = vmatprep.subr.mxu0 0.0
      %286 = vmatpush1.msra.mxu0 %v274
      %287 = vmatprep.subr.mxu0 0.0
      %288 = vmatpush1.msra.mxu0 %v273
      %289 = vmatprep.subr.mxu0 0.0
      %290 = vmatpush1.msra.mxu0 %v272
      %291 = vmatprep.subr.mxu0 0.0
      %292 = vmatpush1.msra.mxu0 %v271
      %293 = vmatprep.subr.mxu0 0.0
      %294 = vmatpush1.msra.mxu0 %v270
      %295 = vmatprep.subr.mxu0 0.0
      %296 = vmatpush1.msra.mxu0 %v269
      %297 = vmatprep.subr.mxu0 0.0
      %298 = vmatpush1.msra.mxu0 %v268
      %299 = vmatprep.subr.mxu0 0.0
      %300 = vmatpush1.msra.mxu0 %v267
      %301 = vmatprep.subr.mxu0 0.0
      %302 = vmatpush1.msra.mxu0 %v266
      %303 = vmatprep.subr.mxu0 0.0
      %304 = vmatpush1.msra.mxu0 %v265
      %305 = vmatprep.subr.mxu0 0.0
      %306 = vmatpush1.msra.mxu0 %v264
      %307 = vmatprep.subr.mxu0 0.0
      %308 = vmatpush1.msra.mxu0 %v263
      %309 = vmatprep.subr.mxu0 0.0
      %310 = vmatpush1.msra.mxu0 %v262
      %311 = vmatprep.subr.mxu0 0.0
      %312 = vmatpush1.msra.mxu0 %v261
      %313 = vmatprep.subr.mxu0 0.0
      %314 = vmatpush1.msra.mxu0 %v260
      %315 = vmatprep.subr.mxu0 0.0
      %316 = vmatpush2.msra.mxu0 0.0
      %317 = vmatprep.subr.mxu0 0.0
      %318 = vmatpush2.msra.mxu0 0.0
      %319 = vmatprep.subr.mxu0 0.0
      %320 = vmatpush2.msra.mxu0 0.0
      %321 = vmatprep.subr.mxu0 0.0
      %322 = vmatpush2.msra.mxu0 0.0
      %323 = vmatprep.subr.mxu0 0.0
      %324 = vmatpush2.msra.mxu0 0.0
      %325 = vmatprep.subr.mxu0 0.0
      %326 = vmatpush2.msra.mxu0 0.0
      %327 = vmatprep.subr.mxu0 0.0
      %328 = vmatpush2.msra.mxu0 0.0
      %329 = vmatprep.subr.mxu0 0.0
      %330 = vmatpush2.msra.mxu0 0.0
      %331 = vmatprep.subr.mxu0 0.0
      %332 = vmatpush2.msra.mxu0 0.0
      %333 = vmatprep.subr.mxu0 0.0
      %334 = vmatpush2.msra.mxu0 0.0
      %335 = vmatprep.subr.mxu0 0.0
      %336 = vmatpush2.msra.mxu0 0.0
      %337 = vmatprep.subr.mxu0 0.0
      %338 = vmatpush2.msra.mxu0 0.0
      %339 = vmatprep.subr.mxu0 0.0
      %340 = vmatpush2.msra.mxu0 0.0
      %341 = vmatprep.subr.mxu0 0.0
      %342 = vmatpush2.msra.mxu0 0.0
      %343 = vmatprep.subr.mxu0 0.0
      %344 = vmatpush2.msra.mxu0 0.0
      %345 = vmatprep.subr.mxu0 0.0
      %346 = vmatpush2.msra.mxu0 0.0
      %347 = vmatprep.mubr.f32.mxu0 0.0
      %348 = vmatmul.mubr.f32.gmra.mxu0 %v252
      %v349 = vpop.f32.mrf.mxu0
      %v350 = vadd.f32 %v281, %v349
      %v351 = vpop.f32.mrf.mxu0
      %352 = vmatprep.mubr.f32.mxu0 0.0
      %353 = vmatmul.mubr.f32.gmra.mxu0 %v253
      %v354 = vpop.f32.mrf.mxu0
      %v355 = vadd.f32 %v281, %v354
      %v356 = vpop.f32.mrf.mxu0
      %357 = vmatprep.mubr.f32.mxu0 0.0
      %358 = vmatmul.mubr.f32.gmra.mxu0 %v254
      %v359 = vpop.f32.mrf.mxu0
      %v360 = vadd.f32 %v281, %v359
      %v361 = vpop.f32.mrf.mxu0
      %362 = vmatprep.mubr.f32.mxu0 0.0
      %363 = vmatmul.mubr.f32.gmra.mxu0 %v255
      %v364 = vpop.f32.mrf.mxu0
      %v365 = vadd.f32 %v281, %v364
      %v366 = vpop.f32.mrf.mxu0
      %367 = vmatprep.mubr.f32.mxu0 0.0
      %368 = vmatmul.mubr.f32.gmra.mxu0 %v256
      %v369 = vpop.f32.mrf.mxu0
      %v370 = vadd.f32 %v281, %v369
      %v371 = vpop.f32.mrf.mxu0
      %372 = vmatprep.mubr.f32.mxu0 0.0
      %373 = vmatmul.mubr.f32.gmra.mxu0 %v257
      %v374 = vpop.f32.mrf.mxu0
      %v375 = vadd.f32 %v281, %v374
      %v376 = vpop.f32.mrf.mxu0
      %377 = vmatprep.mubr.f32.mxu0 0.0
      %378 = vmatmul.mubr.f32.gmra.mxu0 %v258
      %v379 = vpop.f32.mrf.mxu0
      %v380 = vadd.f32 %v281, %v379
      %v381 = vpop.f32.mrf.mxu0
      %382 = vmatprep.mubr.f32.mxu0 0.0
      %383 = vmatmul.mubr.f32.gmra.mxu0 %v259
      %v384 = vpop.f32.mrf.mxu0
      %v385 = vadd.f32 %v281, %v384
      %v386 = vpop.f32.mrf.mxu0
      %387 = vdwg.mxu0
      %v388 = vmul.f32 %v350, 0.5
      %v389 = vmul.f32 %v355, 0.5
      %v390 = vmul.f32 %v360, 0.5
      %v391 = vmul.f32 %v365, 0.5
      %v392 = vmul.f32 %v370, 0.5
      %v393 = vmul.f32 %v375, 0.5
      %v394 = vmul.f32 %v380, 0.5
      %v395 = vmul.f32 %v385, 0.5
      %v396 = vmul.f32 %v350, 0.70710677
      %v397 = vmul.f32 %v355, 0.70710677
      %v398 = vmul.f32 %v360, 0.70710677
      %v399 = vmul.f32 %v365, 0.70710677
      %v400 = vmul.f32 %v370, 0.70710677
      %v401 = vmul.f32 %v375, 0.70710677
      %v402 = vmul.f32 %v380, 0.70710677
      %v403 = vmul.f32 %v385, 0.70710677
      %v404 = verf.f32.pop %v396
      %v405 = verf.f32.pop %v397
      %v406 = verf.f32.pop %v398
      %v407 = verf.f32.pop %v399
      %v408 = verf.f32.pop %v400
      %v409 = verf.f32.pop %v401
      %v410 = verf.f32.pop %v402
      %v411 = verf.f32.pop %v403
      %v412 = vadd.f32 %v404, 1.0
      %v413 = vadd.f32 %v405, 1.0
      %v414 = vadd.f32 %v406, 1.0
      %v415 = vadd.f32 %v407, 1.0
      %v416 = vadd.f32 %v408, 1.0
      %v417 = vadd.f32 %v409, 1.0
      %v418 = vadd.f32 %v410, 1.0
      %v419 = vadd.f32 %v411, 1.0
      %v420 = vmul.f32 %v388, %v412
      %v421 = vmul.f32 %v389, %v413
      %v422 = vmul.f32 %v390, %v414
      %v423 = vmul.f32 %v391, %v415
      %v424 = vmul.f32 %v392, %v416
      %v425 = vmul.f32 %v393, %v417
      %v426 = vmul.f32 %v394, %v418
      %v427 = vmul.f32 %v395, %v419
      %v428 = vld [vmem:[#allocation2] sm:$0xff]
      %v429 = vld [vmem:[#allocation2 + $0x8] sm:$0xff]
      %v430 = vld [vmem:[#allocation2 + $0x10] sm:$0xff]
      %v431 = vld [vmem:[#allocation2 + $0x18] sm:$0xff]
      %v432 = vld [vmem:[#allocation2 + $0x20] sm:$0xff]
      %v433 = vld [vmem:[#allocation2 + $0x28] sm:$0xff]
      %v434 = vld [vmem:[#allocation2 + $0x30] sm:$0xff]
      %v435 = vld [vmem:[#allocation2 + $0x38] sm:$0xff]
      %v436 = vld [vmem:[%s3] sm:$0xff]
      %v437 = vld [vmem:[%s3 + $0x8] sm:$0xff]
      %v438 = vld [vmem:[%s3 + $0x10] sm:$0xff]
      %v439 = vld [vmem:[%s3 + $0x18] sm:$0xff]
      %v440 = vld [vmem:[%s3 + $0x20] sm:$0xff]
      %v441 = vld [vmem:[%s3 + $0x28] sm:$0xff]
      %v442 = vld [vmem:[%s3 + $0x30] sm:$0xff]
      %v443 = vld [vmem:[%s3 + $0x38] sm:$0xff]
      %v444 = vld [vmem:[%s3 + $0x40] sm:$0xff]
      %v445 = vld [vmem:[%s3 + $0x48] sm:$0xff]
      %v446 = vld [vmem:[%s3 + $0x50] sm:$0xff]
      %v447 = vld [vmem:[%s3 + $0x58] sm:$0xff]
      %v448 = vld [vmem:[%s3 + $0x60] sm:$0xff]
      %v449 = vld [vmem:[%s3 + $0x68] sm:$0xff]
      %v450 = vld [vmem:[%s3 + $0x70] sm:$0xff]
      %v451 = vld [vmem:[%s3 + $0x78] sm:$0xff]
      %452 = vmatprep.subr.mxu0 0.0
      %453 = vmatpush1.msra.mxu0 %v451
      %454 = vmatprep.subr.mxu0 0.0
      %455 = vmatpush1.msra.mxu0 %v450
      %456 = vmatprep.subr.mxu0 0.0
      %457 = vmatpush1.msra.mxu0 %v449
      %458 = vmatprep.subr.mxu0 0.0
      %459 = vmatpush1.msra.mxu0 %v448
      %460 = vmatprep.subr.mxu0 0.0
      %461 = vmatpush1.msra.mxu0 %v447
      %462 = vmatprep.subr.mxu0 0.0
      %463 = vmatpush1.msra.mxu0 %v446
      %464 = vmatprep.subr.mxu0 0.0
      %465 = vmatpush1.msra.mxu0 %v445
      %466 = vmatprep.subr.mxu0 0.0
      %467 = vmatpush1.msra.mxu0 %v444
      %468 = vmatprep.subr.mxu0 0.0
      %469 = vmatpush1.msra.mxu0 %v443
      %470 = vmatprep.subr.mxu0 0.0
      %471 = vmatpush1.msra.mxu0 %v442
      %472 = vmatprep.subr.mxu0 0.0
      %473 = vmatpush1.msra.mxu0 %v441
      %474 = vmatprep.subr.mxu0 0.0
      %475 = vmatpush1.msra.mxu0 %v440
      %476 = vmatprep.subr.mxu0 0.0
      %477 = vmatpush1.msra.mxu0 %v439
      %478 = vmatprep.subr.mxu0 0.0
      %479 = vmatpush1.msra.mxu0 %v438
      %480 = vmatprep.subr.mxu0 0.0
      %481 = vmatpush1.msra.mxu0 %v437
      %482 = vmatprep.subr.mxu0 0.0
      %483 = vmatpush1.msra.mxu0 %v436
      %484 = vmatprep.subr.mxu0 0.0
      %485 = vmatpush2.msra.mxu0 0.0
      %486 = vmatprep.subr.mxu0 0.0
      %487 = vmatpush2.msra.mxu0 0.0
      %488 = vmatprep.subr.mxu0 0.0
      %489 = vmatpush2.msra.mxu0 0.0
      %490 = vmatprep.subr.mxu0 0.0
      %491 = vmatpush2.msra.mxu0 0.0
      %492 = vmatprep.subr.mxu0 0.0
      %493 = vmatpush2.msra.mxu0 0.0
      %494 = vmatprep.subr.mxu0 0.0
      %495 = vmatpush2.msra.mxu0 0.0
      %496 = vmatprep.subr.mxu0 0.0
      %497 = vmatpush2.msra.mxu0 0.0
      %498 = vmatprep.subr.mxu0 0.0
      %499 = vmatpush2.msra.mxu0 0.0
      %500 = vmatprep.subr.mxu0 0.0
      %501 = vmatpush2.msra.mxu0 0.0
      %502 = vmatprep.subr.mxu0 0.0
      %503 = vmatpush2.msra.mxu0 0.0
      %504 = vmatprep.subr.mxu0 0.0
      %505 = vmatpush2.msra.mxu0 0.0
      %506 = vmatprep.subr.mxu0 0.0
      %507 = vmatpush2.msra.mxu0 0.0
      %508 = vmatprep.subr.mxu0 0.0
      %509 = vmatpush2.msra.mxu0 0.0
      %510 = vmatprep.subr.mxu0 0.0
      %511 = vmatpush2.msra.mxu0 0.0
      %512 = vmatprep.subr.mxu0 0.0
      %513 = vmatpush2.msra.mxu0 0.0
      %514 = vmatprep.subr.mxu0 0.0
      %515 = vmatpush2.msra.mxu0 0.0
      %516 = vmatprep.mubr.f32.mxu0 0.0
      %517 = vmatmul.mubr.f32.gmra.mxu0 %v420
      %v518 = vpop.f32.mrf.mxu0
      %v519 = vadd.f32 0.0, %v518
      %v520 = vpop.f32.mrf.mxu0
      %521 = vmatprep.mubr.f32.mxu0 0.0
      %522 = vmatmul.mubr.f32.gmra.mxu0 %v421
      %v523 = vpop.f32.mrf.mxu0
      %v524 = vadd.f32 0.0, %v523
      %v525 = vpop.f32.mrf.mxu0
      %526 = vmatprep.mubr.f32.mxu0 0.0
      %527 = vmatmul.mubr.f32.gmra.mxu0 %v422
      %v528 = vpop.f32.mrf.mxu0
      %v529 = vadd.f32 0.0, %v528
      %v530 = vpop.f32.mrf.mxu0
      %531 = vmatprep.mubr.f32.mxu0 0.0
      %532 = vmatmul.mubr.f32.gmra.mxu0 %v423
      %v533 = vpop.f32.mrf.mxu0
      %v534 = vadd.f32 0.0, %v533
      %v535 = vpop.f32.mrf.mxu0
      %536 = vmatprep.mubr.f32.mxu0 0.0
      %537 = vmatmul.mubr.f32.gmra.mxu0 %v424
      %v538 = vpop.f32.mrf.mxu0
      %v539 = vadd.f32 0.0, %v538
      %v540 = vpop.f32.mrf.mxu0
      %541 = vmatprep.mubr.f32.mxu0 0.0
      %542 = vmatmul.mubr.f32.gmra.mxu0 %v425
      %v543 = vpop.f32.mrf.mxu0
      %v544 = vadd.f32 0.0, %v543
      %v545 = vpop.f32.mrf.mxu0
      %546 = vmatprep.mubr.f32.mxu0 0.0
      %547 = vmatmul.mubr.f32.gmra.mxu0 %v426
      %v548 = vpop.f32.mrf.mxu0
      %v549 = vadd.f32 0.0, %v548
      %v550 = vpop.f32.mrf.mxu0
      %551 = vmatprep.mubr.f32.mxu0 0.0
      %552 = vmatmul.mubr.f32.gmra.mxu0 %v427
      %v553 = vpop.f32.mrf.mxu0
      %v554 = vadd.f32 0.0, %v553
      %v555 = vpop.f32.mrf.mxu0
      %556 = vdwg.mxu0
      %v557 = vadd.f32 %v428, %v519
      %v558 = vadd.f32 %v429, %v524
      %v559 = vadd.f32 %v430, %v529
      %v560 = vadd.f32 %v431, %v534
      %v561 = vadd.f32 %v432, %v539
      %v562 = vadd.f32 %v433, %v544
      %v563 = vadd.f32 %v434, %v549
      %v564 = vadd.f32 %v435, %v554
      %565 = vst [vmem:[#allocation2] sm:$0xff] %v557
      %566 = vst [vmem:[#allocation2 + $0x8] sm:$0xff] %v558
      %567 = vst [vmem:[#allocation2 + $0x10] sm:$0xff] %v559
      %568 = vst [vmem:[#allocation2 + $0x18] sm:$0xff] %v560
      %569 = vst [vmem:[#allocation2 + $0x20] sm:$0xff] %v561
      %570 = vst [vmem:[#allocation2 + $0x28] sm:$0xff] %v562
      %571 = vst [vmem:[#allocation2 + $0x30] sm:$0xff] %v563
      %572 = vst [vmem:[#allocation2 + $0x38] sm:$0xff] %v564
      // Predicated region
      $region45: #{_mlp_pallas_impl.1} parent=39 // pred_check
        %p573 = pneg %p240
      $region46: #{_mlp_pallas_impl.1} parent=39 // pred_check_branch
        %575 = sbr.rel (%p573) target = $region48
      $region47: #{_mlp_pallas_impl.1} parent=39 // pred_region
        %v576 = vld [vmem:[#allocation2] sm:$0xff]
        %v577 = vld [vmem:[#allocation2 + $0x8] sm:$0xff]
        %v578 = vld [vmem:[#allocation2 + $0x10] sm:$0xff]
        %v579 = vld [vmem:[#allocation2 + $0x18] sm:$0xff]
        %v580 = vld [vmem:[#allocation2 + $0x20] sm:$0xff]
        %v581 = vld [vmem:[#allocation2 + $0x28] sm:$0xff]
        %v582 = vld [vmem:[#allocation2 + $0x30] sm:$0xff]
        %v583 = vld [vmem:[#allocation2 + $0x38] sm:$0xff]
        %v584 = vld [vmem:[%s4] sm:$0x1]
        %v586 = vlaneseq
        %v587 = vshrl.u32 %v586, 7
        %v588 = vsub.s32 0, %v587
        %v589 = vrot.slane %v584, %v588
        %v591 = vadd.f32 %v576, %v589
        %v592 = vadd.f32 %v577, %v589
        %v593 = vadd.f32 %v578, %v589
        %v594 = vadd.f32 %v579, %v589
        %v595 = vadd.f32 %v580, %v589
        %v596 = vadd.f32 %v581, %v589
        %v597 = vadd.f32 %v582, %v589
        %v598 = vadd.f32 %v583, %v589
        %599 = vst [vmem:[%s238] sm:$0xff] %v591
        %600 = vst [vmem:[%s238 + $0x8] sm:$0xff] %v592
        %601 = vst [vmem:[%s238 + $0x10] sm:$0xff] %v593
        %602 = vst [vmem:[%s238 + $0x18] sm:$0xff] %v594
        %603 = vst [vmem:[%s238 + $0x20] sm:$0xff] %v595
        %604 = vst [vmem:[%s238 + $0x28] sm:$0xff] %v596
        %605 = vst [vmem:[%s238 + $0x30] sm:$0xff] %v597
        %606 = vst [vmem:[%s238 + $0x38] sm:$0xff] %v598
      $region48: #{_mlp_pallas_impl.1} parent=39 // pred_fallthru
        _
      %s607 = smul.u32 8, %s20
      %p608 = scmp.lt.s32.totalorder %s607, 15
      %s609 = scalar_select %p608, %s607, 15
      %s610 = smul.addr %s609, 8
      %s611 = scalar_lea.vmem %s5, %s610
      // Predicated region
      $region49: #{_mlp_pallas_impl.1} parent=39 // pred_check
        %p612 = pneg %p156
      $region50: #{_mlp_pallas_impl.1} parent=39 // pred_check_branch
        %614 = sbr.rel (%p612) target = $region52
      $region51: #{_mlp_pallas_impl.1} parent=39 // pred_region
        %s615 = smul.u32 8, %s20
      $region52: #{_mlp_pallas_impl.1} parent=39 // pred_fallthru
        _
    $region40: #{_mlp_pallas_impl.1} parent=5 // pred_fallthru
      _
    %p616 = scmp.le.s32.totalorder 2, %s11
    // Predicated region
    $region53: #{_mlp_pallas_impl.1} parent=5 // pred_check
      %p617 = pneg %p616
    $region54: #{_mlp_pallas_impl.1} parent=5 // pred_check_branch
      %619 = sbr.rel (%p617) target = $region56
    $region55: #{_mlp_pallas_impl.1} parent=5 // pred_region
      %s620 = ssub.s32 %s11, 2
      // Predicated region
      $region57: #{_mlp_pallas_impl.1} parent=55 // pred_check
        %p621 = pneg %p162
      $region58: #{_mlp_pallas_impl.1} parent=55 // pred_check_branch
        %623 = sbr.rel (%p621) target = $region60
      $region59: #{_mlp_pallas_impl.1} parent=55 // pred_region
        %s624 = smul.u32 8, %s22
        %p625 = scmp.lt.s32.totalorder %s624, 15
        %s626 = scalar_select %p625, %s624, 15
        %s627 = smul.addr %s626, 8
        %s628 = scalar_lea.vmem %s5, %s627
      $region60: #{_mlp_pallas_impl.1} parent=55 // pred_fallthru
        _
    $region56: #{_mlp_pallas_impl.1} parent=5 // pred_fallthru
      _
  $region6: #{_mlp_pallas_impl.1} parent=0 // loop_footer
    %s15 = sadd.s32 1, %s11
  $region7: #{_mlp_pallas_impl.1} parent=0 // loop_footer_branch
    %10 = sbr.rel target = $region3
  $region8: #{_mlp_pallas_impl.1} parent=0 // loop_exit
    _

</llo_original>
